<compile_context>
chip_gen: v6e
topology: v6e:2x2x1
jax: 0.10.0
libtpu: 0.0.40
codegen_flags: <defaults>
</compile_context>

<pallas_src>
import numpy as np

import jax
import jax.numpy as jnp
from jax.experimental import pallas as pl
from jax.experimental.pallas import tpu as pltpu


def _sinusoid_table(n_position: int, d_hid: int) -> jnp.ndarray:
    """Mirror of PositionalEncoding._get_sinusoid_encoding_table (without the
    leading unsqueeze(0); the broadcast over batch happens in the kernel)."""
    pos = np.arange(n_position, dtype=np.float64)[:, None]              # [P, 1]
    hid = np.arange(d_hid, dtype=np.float64)[None, :]                   # [1, D]
    angles = pos / np.power(10000.0, 2.0 * np.floor(hid / 2.0) / d_hid)  # [P, D]
    table = np.empty((n_position, d_hid), dtype=np.float64)
    table[:, 0::2] = np.sin(angles[:, 0::2])
    table[:, 1::2] = np.cos(angles[:, 1::2])
    return jnp.asarray(table, dtype=jnp.float32)


def _pos_enc_kernel(x_ref, pos_ref, out_ref):
    # x_ref:   (bt, tr) tile of batch rows (lane-dense last dim)
    # pos_ref: (1,  tr) positional-encoding tile, sublane-broadcast over batch
    out_ref[...] = x_ref[...] + pos_ref[...]


def _choose_tiles(B: int, row: int, itemsize: int, target_block_bytes: int):
    """Pick (bt, tr): sublane-aligned batch tile and 128-aligned lane tile,
    each bounded by ~target_block_bytes, preferring exact divisors (no masked
    tail blocks)."""
    sub = max(8, 32 // itemsize)          # f32: 8, bf16: 16, int8/fp8: 32

    # ---- lane (flattened L*D) tile ----
    bt_floor = min(B, sub)
    tr_cap = max(128, target_block_bytes // max(1, bt_floor * itemsize))
    if row <= tr_cap:
        tr = row                          # full extent is always legal
    else:
        cap128 = (tr_cap // 128) * 128
        tr = 0
        t = cap128
        while t >= 128:                   # largest 128-multiple dividing row
            if row % t == 0:
                tr = t
                break
            t -= 128
        if tr == 0:
            tr = cap128                   # accept a masked tail block

    # ---- sublane (batch) tile ----
    bt_cap = max(1, target_block_bytes // max(1, tr * itemsize))
    if B <= bt_cap:
        bt = B                            # full extent is always legal
    else:
        bt_cap = max(sub, (bt_cap // sub) * sub)
        bt = 0
        t = bt_cap
        while t >= sub:                   # largest sub-multiple dividing B
            if B % t == 0:
                bt = t
                break
            t -= sub
        if bt == 0:
            bt = bt_cap                   # accept a masked tail block
        bt = min(bt, B)

    return bt, tr, sub


def positional_encoding(x: jnp.ndarray, pos_table: jnp.ndarray) -> jnp.ndarray:
    """x: [B, L, D]; pos_table: [n_position, D]."""
    B, L, D = x.shape
    n_position = pos_table.shape[0]
    assert L <= n_position, "sequence length exceeds positional table size"

    # Flatten (L, D) into one lane-dense row; batch rows stack on sublanes.
    row = L * D
    x2 = x.reshape(B, row)
    # Match the activation dtype host-side (single native-width add in-kernel,
    # half the pos DMA traffic for bf16 activations).
    pos2 = pos_table[:L].reshape(1, row).astype(x.dtype)

    itemsize = jnp.dtype(x.dtype).itemsize

    # Derive a per-block byte budget from the physical VMEM of this generation
    # (v7x has only 64 MiB/TC); ~2 MiB blocks already saturate the HBM roofline.
    try:
        vmem_cap = int(pltpu.get_tpu_info().vmem_capacity_bytes)
    except Exception:
        vmem_cap = 64 << 20
    target_block_bytes = min(2 << 20, max(512 << 10, vmem_cap // 16))

    bt, tr, sub = _choose_tiles(B, row, itemsize, target_block_bytes)

    # If everything fit in a single block, try to expose >=2 batch blocks so
    # both TensorCores (v7x megacore) get work.  Only do it if alignment holds.
    if pl.cdiv(B, bt) * pl.cdiv(row, tr) < 2 and B >= 2 * sub:
        half = -(-B // 2)
        bt2 = ((half + sub - 1) // sub) * sub
        if 0 < bt2 < B:
            bt = bt2

    grid = (pl.cdiv(B, bt), pl.cdiv(row, tr))

    # Pipelined VMEM footprint: double-buffered x + out blocks and pos tiles.
    x_block_bytes = bt * tr * itemsize
    pos_block_bytes = tr * itemsize
    needed = 2 * (2 * x_block_bytes) + 2 * pos_block_bytes
    vmem_limit = int(min(max(4 * needed, 32 << 20), 48 << 20))

    out2 = pl.pallas_call(
        _pos_enc_kernel,
        out_shape=jax.ShapeDtypeStruct((B, row), x.dtype),
        grid_spec=pltpu.PrefetchScalarGridSpec(
            num_scalar_prefetch=0,
            grid=grid,
            in_specs=[
                pl.BlockSpec((bt, tr), lambda i, j: (i, j)),   # batch-row tile
                pl.BlockSpec((1, tr), lambda i, j: (0, j)),    # pos tile (bcast)
            ],
            out_specs=pl.BlockSpec((bt, tr), lambda i, j: (i, j)),
        ),
        compiler_params=pltpu.CompilerParams(
            dimension_semantics=("parallel", "parallel"),
            vmem_limit_bytes=vmem_limit,
        ),
    )(x2, pos2)

    return out2.reshape(B, L, D)


def reference_positional_encoding(x, pos_table):
    """Pure-JAX reference mirroring the PyTorch forward."""
    L = x.shape[1]
    return x + pos_table[:L][None, :, :].astype(x.dtype)


if __name__ == "__main__":
    # Small, deterministic problem consistent with the module defaults.
    B, L, d_hid = 2, 8, 32
    n_position = 200

    key = jax.random.PRNGKey(0)
    x = jax.random.normal(key, (B, L, d_hid), dtype=jnp.float32)

    pos_table = _sinusoid_table(n_position, d_hid)   # registered buffer

    out = positional_encoding(x, pos_table)
    out = jax.block_until_ready(out)

    ref = reference_positional_encoding(x, pos_table)

    assert out.shape == (B, L, d_hid)
    assert jnp.allclose(out, ref, atol=1e-6, rtol=1e-6)

    print("KERNEL_OK")
</pallas_src>

<mosaic_0001>
module attributes {stable_mosaic.version = 11 : i64} {
  func.func @_pos_enc_kernel(%arg0: i32, %arg1: i32, %arg2: memref<2x256xf32, #tpu.memory_space<vmem>>, %arg3: memref<1x256xf32, #tpu.memory_space<vmem>>, %arg4: memref<2x256xf32, #tpu.memory_space<vmem>>) attributes {dimension_semantics = [#tpu.dimension_semantics<parallel>, #tpu.dimension_semantics<parallel>], iteration_bounds = array<i64: 1, 1>, scalar_prefetch = 0 : i64, scratch_operands = 0 : i64, tpu.core_type = #tpu.core_type<tc>, window_params = [{transform_indices = @transform_0, window_bounds = array<i64: 2, 256>}, {transform_indices = @transform_1, window_bounds = array<i64: 1, 256>}, {transform_indices = @transform_2, window_bounds = array<i64: 2, 256>}]} {
    %c0 = arith.constant 0 : index
    %c0_0 = arith.constant 0 : index
    %0 = vector.load %arg2[%c0, %c0_0] : memref<2x256xf32, #tpu.memory_space<vmem>>, vector<2x256xf32>
    %c0_1 = arith.constant 0 : index
    %c0_2 = arith.constant 0 : index
    %1 = vector.load %arg3[%c0_1, %c0_2] : memref<1x256xf32, #tpu.memory_space<vmem>>, vector<1x256xf32>
    %2 = vector.broadcast %1 : vector<1x256xf32> to vector<2x256xf32>
    %3 = arith.addf %0, %2 : vector<2x256xf32>
    %c0_3 = arith.constant 0 : index
    %c0_4 = arith.constant 0 : index
    %4 = vector.load %arg4[%c0_3, %c0_4] : memref<2x256xf32, #tpu.memory_space<vmem>>, vector<2x256xf32>
    tpu.vector_store %arg4[%c0_3, %c0_4], %3 {strides = array<i32>} : memref<2x256xf32, #tpu.memory_space<vmem>>, vector<2x256xf32>,
    return
  }
  func.func @transform_0(%arg0: i32, %arg1: i32) -> (i32, i32) {
    %c0_i32 = arith.constant 0 : i32
    return %arg0, %arg1 : i32, i32
  }
  func.func @transform_1(%arg0: i32, %arg1: i32) -> (i32, i32) {
    %c0_i32 = arith.constant 0 : i32
    %c0_i32_0 = arith.constant 0 : i32
    return %c0_i32, %arg1 : i32, i32
  }
  func.func @transform_2(%arg0: i32, %arg1: i32) -> (i32, i32) {
    %c0_i32 = arith.constant 0 : i32
    return %arg0, %arg1 : i32, i32
  }
}

</mosaic_0001>

<llo_original>
// kernel: tpu_custom_call.1
$region0: #{tpu_custom_call.1}
  #allocation0 [shape = 'u32[]', space=smem, size = 0x4, offset = 0x4, fixed_abs, tag = 'smem constant byte address 0x4 - core index']
  #allocation1 [shape = 'u32[144,128]{1,0:T(1,128)}', space=vmem, size = 0x12000, scoped, tag = 'internal scratch']
  %s0 = inlined_call_operand.hbm [shape: f32[2,256], index: 0, kind: input, shape index: {}]
  %s1 = inlined_call_operand.hbm [shape: f32[1,256], index: 1, kind: input, shape index: {}]
  %s2 = inlined_call_operand.hbm [shape: f32[2,256], index: 2, kind: output, shape index: {}]
  %s3 = sld [smem:[#allocation0]]
  $region26: #{tpu_custom_call.1} parent=0
    _
  %s5 = ssub.s32 1, %s3
  %s6 = scalar_select 0, %s5, %s3
  $region1: #{tpu_custom_call.1} parent=0
    #allocation2 [shape = 'u8[2048]{0}', space=vmem, size = 0x800, scoped, tag = 'input window, operand 0, single buffered']
    #allocation3 [shape = 's32[1]{0}', space=sflag, size = 0x4, scoped, tag = 'scoped memory for tpu_custom_call.1']
    #allocation4 [shape = 's32[1]{0}', space=sflag, size = 0x4, scoped, tag = 'scoped memory for tpu_custom_call.1']
    #allocation5 [shape = 'u8[1024]{0}', space=vmem, size = 0x400, scoped, tag = 'input window, operand 1, single buffered']
    #allocation6 [shape = 's32[1]{0}', space=sflag, size = 0x4, scoped, tag = 'scoped memory for tpu_custom_call.1']
    #allocation7 [shape = 'u8[2048]{0}', space=vmem, size = 0x800, scoped, tag = 'output window, operand 0, single buffered']
    %7 = vsyncpa [#allocation3], 0
    %8 = vsyncpa [#allocation6], 0
    %9 = vsyncpa [#allocation4], 0
    // Predicated region
    $region2: #{tpu_custom_call.1} parent=1 // pred_check
      _
    $region3: #{tpu_custom_call.1} parent=1 // pred_check_branch
      %11 = sbr.rel (0) target = $region5
    $region4: #{tpu_custom_call.1} parent=1 // pred_region
      %s13 = ssub.s32 64, 64
      %14 = vsyncadd [#allocation3], %s13
      %s16 = sshll.u32 [#allocation2], 4
      %s17 = int_to_ptr.vmem [resolvable:$true] %s16
      %19 = dma.hbm_to_vmem [thread:$0]  %s0, 64, %s17, [#allocation3]
    $region5: #{tpu_custom_call.1} parent=1 // pred_fallthru
      _
    // Predicated region
    $region6: #{tpu_custom_call.1} parent=1 // pred_check
      _
    $region7: #{tpu_custom_call.1} parent=1 // pred_check_branch
      %21 = sbr.rel (0) target = $region9
    $region8: #{tpu_custom_call.1} parent=1 // pred_region
      %s23 = ssub.s32 32, 32
      %24 = vsyncadd [#allocation6], %s23
      %s26 = sshll.u32 [#allocation5], 4
      %s27 = int_to_ptr.vmem [resolvable:$true] %s26
      %29 = dma.hbm_to_vmem [thread:$0]  %s1, 32, %s27, [#allocation6]
    $region9: #{tpu_custom_call.1} parent=1 // pred_fallthru
      _
    // Predicated region
    $region10: #{tpu_custom_call.1} parent=1 // pred_check
      _
    $region11: #{tpu_custom_call.1} parent=1 // pred_check_branch
      %31 = sbr.rel (0) target = $region13
    $region12: #{tpu_custom_call.1} parent=1 // pred_region
      %32 = dma.done [#allocation3], 64
    $region13: #{tpu_custom_call.1} parent=1 // pred_fallthru
      _
    // Predicated region
    $region14: #{tpu_custom_call.1} parent=1 // pred_check
      _
    $region15: #{tpu_custom_call.1} parent=1 // pred_check_branch
      %34 = sbr.rel (0) target = $region17
    $region16: #{tpu_custom_call.1} parent=1 // pred_region
      %35 = dma.done [#allocation6], 32
    $region17: #{tpu_custom_call.1} parent=1 // pred_fallthru
      _
    %v36 = vld [vmem:[#allocation2] sm:$0xf]
    %v37 = vld [vmem:[#allocation5] sm:$0x3]
    %v39 = vlaneseq
    %v40 = vshrl.u32 %v39, 7
    %v41 = vsub.s32 0, %v40
    %v42 = vrot.slane %v37, %v41
    %v43 = vlaneseq
    %v44 = vshrl.u32 %v43, 7
    %v45 = vsub.s32 1, %v44
    %v46 = vrot.slane %v37, %v45
    %v47 = vcombine.low %v42, %v46
    %v49 = vunpack.c.l.s4 1983009808
    %v50 = vunpack.c.0.s8 %v49
    %v51 = vlaneseq
    %v52 = vshrl.u32 %v51, 7
    %v53 = vsub.s32 %v50, %v52
    %v54 = vrot.slane %v47, %v53
    %v56 = vadd.f32 %v36, %v54
    %57 = vst [vmem:[#allocation7] sm:$0xf] %v56
    // Predicated region
    $region18: #{tpu_custom_call.1} parent=1 // pred_check
      _
    $region19: #{tpu_custom_call.1} parent=1 // pred_check_branch
      %59 = sbr.rel (0) target = $region21
    $region20: #{tpu_custom_call.1} parent=1 // pred_region
      %s61 = ssub.s32 64, 64
      %62 = vsyncadd [#allocation4], %s61
      %s64 = sshll.u32 [#allocation7], 4
      %s65 = int_to_ptr.vmem [resolvable:$true] %s64
      %67 = dma.vmem_to_hbm [thread:$0]  %s65, 64, %s2, [#allocation4]
    $region21: #{tpu_custom_call.1} parent=1 // pred_fallthru
      _
    // Predicated region
    $region22: #{tpu_custom_call.1} parent=1 // pred_check
      _
    $region23: #{tpu_custom_call.1} parent=1 // pred_check_branch
      %69 = sbr.rel (0) target = $region25
    $region24: #{tpu_custom_call.1} parent=1 // pred_region
      %70 = dma.done [#allocation4], 64
    $region25: #{tpu_custom_call.1} parent=1 // pred_fallthru
      _
    %71 = vsyncpa [#allocation3], 1
    %72 = vsyncpa [#allocation6], 1
    %73 = vsyncpa [#allocation4], 1

</llo_original>
